<compile_context>
chip_gen: v6e
topology: v6e:2x2x1
jax: 0.10.0
libtpu: 0.0.40
codegen_flags: <defaults>
</compile_context>

<pallas_src>
import functools
import math

import jax
import jax.numpy as jnp
from jax import lax
from jax.experimental import pallas as pl
from jax.experimental.pallas import tpu as pltpu

_LANE = 128
_SUBLANE = 8
_LOG_CLAMP = math.log(1e-10)


def _round_up(x, m):
    return (x + m - 1) // m * m


def _loss_kernel(ids_ref, node_emb_hbm, w_ref, b_ref, tgt_ref, partial_ref,
                 emb_sel_ref, acc_ref, sem,
                 *, n_valid, tn, tiles_per_split, mask_cols):
    c = pl.program_id(0)          # outer ("parallel") split of the column stream
    j = pl.program_id(1)          # inner ("arbitrary") column-tile index
    bsz = emb_sel_ref.shape[0]

    # ---- one-time setup per split: DMA-gather the B selected embedding rows ----
    @pl.when(j == 0)
    def _():
        acc_ref[...] = jnp.zeros_like(acc_ref)

        def _start(i, carry):
            pltpu.make_async_copy(
                node_emb_hbm.at[pl.ds(ids_ref[i], 1), :],
                emb_sel_ref.at[pl.ds(i, 1), :],
                sem.at[i]).start()
            return carry

        def _wait(i, carry):
            pltpu.make_async_copy(
                node_emb_hbm.at[pl.ds(ids_ref[i], 1), :],
                emb_sel_ref.at[pl.ds(i, 1), :],
                sem.at[i]).wait()
            return carry

        lax.fori_loop(0, bsz, _start, 0)   # issue all B row copies (overlapped)
        lax.fori_loop(0, bsz, _wait, 0)    # then wait for all of them

    # ---- per tile: logits, column-wise (axis=0) log-softmax, CE partial --------
    a = emb_sel_ref[...]
    wt = w_ref[...]
    if a.dtype != wt.dtype:                 # bf16-native MXU path if w streams bf16
        a = a.astype(wt.dtype)
    logits = jnp.dot(a, wt, preferred_element_type=jnp.float32)
    logits = logits + b_ref[...].astype(jnp.float32)

    m = jnp.max(logits, axis=0, keepdims=True)            # [1, TN]
    e = jnp.exp(logits - m)                                # [B, TN]  (only big EUP op)
    denom = jnp.sum(e, axis=0, keepdims=True)              # [1, TN]
    logsof = logits - m - jnp.log(denom)                    # [B, TN]
    logsof = jnp.maximum(logsof, jnp.float32(_LOG_CLAMP))   # == clamp(sof, 1e-10)

    contrib = tgt_ref[...].astype(jnp.float32) * logsof
    if mask_cols:
        # Ragged last tile: columns past the true N read garbage -> mask to 0.
        tile_idx = c * tiles_per_split + j
        col = tile_idx * tn + lax.broadcasted_iota(jnp.int32, contrib.shape, 1)
        contrib = jnp.where(col < n_valid, contrib, jnp.float32(0.0))
    acc_ref[...] += contrib                 # pure VPU add; no per-step reduce

    # ---- finalize this split: one cross-lane reduce + scalar store -------------
    @pl.when(j == pl.num_programs(1) - 1)
    def _():
        partial_ref[0, 0] = -jnp.sum(acc_ref[...])


def _pick_tile(n, h, bsz, w_bytes, t_bytes):
    # Bytes held per output column: double-buffered w/b/targets tiles + accumulator.
    per_col = (2 * (max(h, _SUBLANE) * w_bytes + _SUBLANE * 4
                    + max(bsz, _SUBLANE) * t_bytes)
               + max(bsz, _SUBLANE) * 4)
    budget = 20 * 1024 * 1024                       # conservative across v5e/v6e/v7x
    tn = max(_LANE, (budget // per_col) // _LANE * _LANE)
    tn = min(tn, 2048)
    if n <= tn:
        return n          # single full-width tile (block dim == full array dim)
    return tn             # multiple of 128; ragged tail is masked in-kernel


@jax.jit
def network_model_forward(node_embedding, w, b, ids, targets):
    """Pallas implementation of NetworkModel.forward.

    node_embedding: [Nc, H]           (stays in HBM; only the B selected rows move)
    w:              [H, N]  (N == Nc) (streamed through VMEM in column tiles)
    b:              [N]
    ids:            [B] int32         (scalar-prefetched into SMEM)
    targets:        [B, N]            (the `emb` distribution in the torch code)
    returns scalar f32 loss.
    """
    nc, h = node_embedding.shape
    _, n = w.shape
    bsz = ids.shape[0]            # softmax axis: never padded (ideally B % 8 == 0)

    w_bytes = jnp.dtype(w.dtype).itemsize
    t_bytes = jnp.dtype(targets.dtype).itemsize

    tn = _pick_tile(n, h, bsz, w_bytes, t_bytes)
    tiles_total = (n + tn - 1) // tn
    mask_cols = (n % tn) != 0

    # v7x has 2 TensorCores: shard the column stream across them when it splits
    # evenly (on 1-TC chips the outer axis is just a serial loop).
    n_split = 2 if (tiles_total >= 2 and tiles_total % 2 == 0) else 1
    tiles_per_split = tiles_total // n_split
    grid = (n_split, tiles_per_split)

    b2d = b.reshape(1, n)                    # O(N) bytes, trivial
    ids32 = ids.astype(jnp.int32)

    # Explicit VMEM budget: double-buffered streamed tiles + resident scratch.
    tnp = _round_up(tn, _LANE)
    bs8 = _round_up(bsz, _SUBLANE)
    ws = (2 * _round_up(h, _SUBLANE) * tnp * w_bytes     # w tiles (x2 buffers)
          + 2 * _SUBLANE * tnp * 4                       # b tiles
          + 2 * bs8 * tnp * t_bytes                      # targets tiles
          + bs8 * _round_up(h, _LANE) * 4                # gathered emb_selected
          + bs8 * tnp * 4)                               # CE accumulator
    vmem_limit = int(min(64 * 1024 * 1024, ws + 8 * 1024 * 1024))

    kernel = functools.partial(
        _loss_kernel, n_valid=n, tn=tn,
        tiles_per_split=tiles_per_split, mask_cols=mask_cols)

    col_map = lambda c, j, ids_ref: (0, c * tiles_per_split + j)

    partials = pl.pallas_call(
        kernel,
        out_shape=jax.ShapeDtypeStruct((n_split, 1), jnp.float32),
        grid_spec=pltpu.PrefetchScalarGridSpec(
            num_scalar_prefetch=1,
            grid=grid,
            in_specs=[
                pl.BlockSpec(memory_space=pl.ANY),         # node_embedding (HBM)
                pl.BlockSpec((h, tn), col_map),            # w column tile
                pl.BlockSpec((1, tn), col_map),            # b column tile
                pl.BlockSpec((bsz, tn), col_map),          # targets column tile
            ],
            out_specs=pl.BlockSpec((1, 1), lambda c, j, ids_ref: (c, 0),
                                   memory_space=pltpu.SMEM),
            scratch_shapes=[
                pltpu.VMEM((bsz, h), node_embedding.dtype),  # gathered emb rows
                pltpu.VMEM((bsz, tn), jnp.float32),          # elementwise CE acc
                pltpu.SemaphoreType.DMA((bsz,)),             # per-row gather sems
            ],
        ),
        compiler_params=pltpu.CompilerParams(
            dimension_semantics=("parallel", "arbitrary"),
            vmem_limit_bytes=vmem_limit,
        ),
    )(ids32, node_embedding, w, b2d, targets)

    return jnp.sum(partials) * jnp.float32(1.0 / bsz)


def _reference_forward(node_embedding, w, b, ids, targets):
    emb_selected = jnp.take(node_embedding, ids, axis=0)
    logits = emb_selected @ w + b
    sof = jax.nn.softmax(logits, axis=0)
    sof = jnp.maximum(sof, 1e-10)
    return jnp.mean(-jnp.sum(targets * jnp.log(sof), axis=1))


if __name__ == "__main__":
    # Small, deterministic setup consistent with the module's __init__.
    num_children = 8      # len(children)
    hidden_dim_n = 32     # args.hidden_dim_n
    batch = 8             # number of ids in data[0]

    key = jax.random.PRNGKey(0)
    k_emb, k_w, k_b, k_ids, k_tgt = jax.random.split(key, 5)

    # nn.init.uniform_(a=-1, b=1) for embedding, w, b.
    node_embedding = jax.random.uniform(
        k_emb, (num_children, hidden_dim_n), jnp.float32, minval=-1.0, maxval=1.0
    )
    w = jax.random.uniform(
        k_w, (hidden_dim_n, num_children), jnp.float32, minval=-1.0, maxval=1.0
    )
    b = jax.random.uniform(
        k_b, (num_children,), jnp.float32, minval=-1.0, maxval=1.0
    )

    # data = (ids, emb): ids index node_embedding rows, emb is the target
    # distribution multiplied against log-softmax.
    ids = jax.random.randint(k_ids, (batch,), 0, num_children, dtype=jnp.int32)
    targets = jax.nn.softmax(
        jax.random.normal(k_tgt, (batch, num_children), jnp.float32), axis=1
    )

    loss = network_model_forward(node_embedding, w, b, ids, targets)
    loss = jax.block_until_ready(loss)

    ref = _reference_forward(node_embedding, w, b, ids, targets)
    assert jnp.allclose(loss, ref, atol=1e-5, rtol=1e-5), (loss, ref)

    print("KERNEL_OK")
</pallas_src>

<mosaic_0001>
module attributes {stable_mosaic.version = 11 : i64} {
  func.func @_loss_kernel(%arg0: i32, %arg1: i32, %arg2: memref<8xi32, #tpu.memory_space<smem>>, %arg3: memref<8x32xf32, #tpu.memory_space<any>>, %arg4: memref<32x8xf32, #tpu.memory_space<vmem>>, %arg5: memref<1x8xf32, #tpu.memory_space<vmem>>, %arg6: memref<8x8xf32, #tpu.memory_space<vmem>>, %arg7: memref<1x1xf32, #tpu.memory_space<smem>>, %arg8: memref<8x32xf32, #tpu.memory_space<vmem>>, %arg9: memref<8x8xf32, #tpu.memory_space<vmem>>, %arg10: memref<8x!tpu.dma_semaphore, #tpu.memory_space<semaphore_mem>>) attributes {dimension_semantics = [#tpu.dimension_semantics<parallel>, #tpu.dimension_semantics<arbitrary>], iteration_bounds = array<i64: 1, 1>, scalar_prefetch = 1 : i64, scratch_operands = 3 : i64, tpu.core_type = #tpu.core_type<tc>, window_params = [{}, {transform_indices = @transform_1, window_bounds = array<i64: 32, 8>}, {transform_indices = @transform_2, window_bounds = array<i64: 1, 8>}, {transform_indices = @transform_3, window_bounds = array<i64: 8, 8>}, {transform_indices = @transform_4, window_bounds = array<i64: 1, 1>}]} {
    %c0_i32 = arith.constant 0 : i32
    %0 = arith.cmpi eq, %arg1, %c0_i32 : i32
    %1 = arith.extui %0 : i1 to i32
    %c0_i32_0 = arith.constant 0 : i32
    %2 = arith.cmpi ne, %1, %c0_i32_0 : i32
    scf.if %2 {
      %cst_17 = arith.constant 0.000000e+00 : f32
      %31 = vector.broadcast %cst_17 : f32 to vector<8x8xf32>
      %c0_18 = arith.constant 0 : index
      %c0_19 = arith.constant 0 : index
      %32 = vector.load %arg9[%c0_18, %c0_19] : memref<8x8xf32, #tpu.memory_space<vmem>>, vector<8x8xf32>
      tpu.vector_store %arg9[%c0_18, %c0_19], %31 {strides = array<i32>} : memref<8x8xf32, #tpu.memory_space<vmem>>, vector<8x8xf32>,
      %c0_i32_20 = arith.constant 0 : i32
      %c8_i32 = arith.constant 8 : i32
      %33 = arith.addi %c0_i32_20, %c8_i32 : i32
      %c1_i32 = arith.constant 1 : i32
      scf.for %arg11 = %c0_i32_20 to %33 step %c1_i32  : i32 {
        %35 = arith.index_cast %arg11 : i32 to index
        %36 = memref.load %arg2[%35] : memref<8xi32, #tpu.memory_space<smem>>
        %c0_i32_26 = arith.constant 0 : i32
        %37 = tpu.memref_slice %arg3[%36, %c0_i32_26] : memref<8x32xf32, #tpu.memory_space<any>> -> memref<1x32xf32, #tpu.memory_space<any>>
        %c0_i32_27 = arith.constant 0 : i32
        %38 = tpu.memref_slice %arg8[%arg11, %c0_i32_27] : memref<8x32xf32, #tpu.memory_space<vmem>> -> memref<1x32xf32, #tpu.memory_space<vmem>>
        %39 = tpu.memref_slice %arg10[%arg11] : memref<8x!tpu.dma_semaphore, #tpu.memory_space<semaphore_mem>> -> memref<1x!tpu.dma_semaphore, #tpu.memory_space<semaphore_mem>>
        %40 = tpu.memref_squeeze %39 : memref<1x!tpu.dma_semaphore, #tpu.memory_space<semaphore_mem>> -> memref<!tpu.dma_semaphore, #tpu.memory_space<semaphore_mem>>
        tpu.enqueue_dma source(%37 : memref<1x32xf32, #tpu.memory_space<any>>) target(%38 : memref<1x32xf32, #tpu.memory_space<vmem>>) target_semaphore(%40 : memref<!tpu.dma_semaphore, #tpu.memory_space<semaphore_mem>>)
      }
      %c8_i32_21 = arith.constant 8 : i32
      %c0_i32_22 = arith.constant 0 : i32
      %c8_i32_23 = arith.constant 8 : i32
      %34 = arith.addi %c0_i32_22, %c8_i32_23 : i32
      %c1_i32_24 = arith.constant 1 : i32
      scf.for %arg11 = %c0_i32_22 to %34 step %c1_i32_24  : i32 {
        %35 = arith.index_cast %arg11 : i32 to index
        %36 = memref.load %arg2[%35] : memref<8xi32, #tpu.memory_space<smem>>
        %c0_i32_26 = arith.constant 0 : i32
        %37 = tpu.memref_slice %arg3[%36, %c0_i32_26] : memref<8x32xf32, #tpu.memory_space<any>> -> memref<1x32xf32, #tpu.memory_space<any>>
        %c0_i32_27 = arith.constant 0 : i32
        %38 = tpu.memref_slice %arg8[%arg11, %c0_i32_27] : memref<8x32xf32, #tpu.memory_space<vmem>> -> memref<1x32xf32, #tpu.memory_space<vmem>>
        %39 = tpu.memref_slice %arg10[%arg11] : memref<8x!tpu.dma_semaphore, #tpu.memory_space<semaphore_mem>> -> memref<1x!tpu.dma_semaphore, #tpu.memory_space<semaphore_mem>>
        %40 = tpu.memref_squeeze %39 : memref<1x!tpu.dma_semaphore, #tpu.memory_space<semaphore_mem>> -> memref<!tpu.dma_semaphore, #tpu.memory_space<semaphore_mem>>
        tpu.wait_dma2 semaphore(%40 : memref<!tpu.dma_semaphore, #tpu.memory_space<semaphore_mem>>) src(%37 : memref<1x32xf32, #tpu.memory_space<any>>) dst(%38 : memref<1x32xf32, #tpu.memory_space<vmem>>)
      }
      %c8_i32_25 = arith.constant 8 : i32
    } else {
    }
    %c0 = arith.constant 0 : index
    %c0_1 = arith.constant 0 : index
    %3 = vector.load %arg8[%c0, %c0_1] : memref<8x32xf32, #tpu.memory_space<vmem>>, vector<8x32xf32>
    %c0_2 = arith.constant 0 : index
    %c0_3 = arith.constant 0 : index
    %4 = vector.load %arg4[%c0_2, %c0_3] : memref<32x8xf32, #tpu.memory_space<vmem>>, vector<32x8xf32>
    %cst = arith.constant dense<0.000000e+00> : vector<8x8xf32>
    %5 = tpu.matmul %3, %4, %cst {dimension_numbers = #tpu.dot_dimension_numbers<[1], [0], [0], [1], [0, 0, 1, 1], [], []>} : vector<8x32xf32>, vector<32x8xf32>, vector<8x8xf32> -> vector<8x8xf32>
    %c0_4 = arith.constant 0 : index
    %c0_5 = arith.constant 0 : index
    %6 = vector.load %arg5[%c0_4, %c0_5] : memref<1x8xf32, #tpu.memory_space<vmem>>, vector<1x8xf32>
    %7 = vector.broadcast %6 : vector<1x8xf32> to vector<8x8xf32>
    %8 = arith.addf %5, %7 : vector<8x8xf32>
    %cst_6 = arith.constant dense<0xFF800000> : vector<8xf32>
    %9 = vector.multi_reduction <maximumf>, %8, %cst_6 [0] : vector<8x8xf32> to vector<8xf32>
    %10 = vector.shape_cast %9 : vector<8xf32> to vector<1x8xf32>
    %11 = vector.broadcast %10 : vector<1x8xf32> to vector<8x8xf32>
    %12 = arith.subf %8, %11 : vector<8x8xf32>
    %13 = math.exp %12 : vector<8x8xf32>
    %cst_7 = arith.constant dense<0.000000e+00> : vector<8xf32>
    %14 = vector.multi_reduction <add>, %13, %cst_7 [0] : vector<8x8xf32> to vector<8xf32>
    %15 = vector.shape_cast %14 : vector<8xf32> to vector<1x8xf32>
    %16 = vector.broadcast %10 : vector<1x8xf32> to vector<8x8xf32>
    %17 = arith.subf %8, %16 : vector<8x8xf32>
    %18 = math.log %15 : vector<1x8xf32>
    %19 = vector.broadcast %18 : vector<1x8xf32> to vector<8x8xf32>
    %20 = arith.subf %17, %19 : vector<8x8xf32>
    %cst_8 = arith.constant -23.0258503 : f32
    %21 = vector.broadcast %cst_8 : f32 to vector<8x8xf32>
    %22 = arith.maximumf %20, %21 : vector<8x8xf32>
    %c0_9 = arith.constant 0 : index
    %c0_10 = arith.constant 0 : index
    %23 = vector.load %arg6[%c0_9, %c0_10] : memref<8x8xf32, #tpu.memory_space<vmem>>, vector<8x8xf32>
    %24 = arith.mulf %23, %22 : vector<8x8xf32>
    %c0_11 = arith.constant 0 : index
    %c0_12 = arith.constant 0 : index
    %25 = vector.load %arg9[%c0_11, %c0_12] : memref<8x8xf32, #tpu.memory_space<vmem>>, vector<8x8xf32>
    %26 = arith.addf %25, %24 : vector<8x8xf32>
    %c0_13 = arith.constant 0 : index
    %c0_14 = arith.constant 0 : index
    %27 = vector.load %arg9[%c0_13, %c0_14] : memref<8x8xf32, #tpu.memory_space<vmem>>, vector<8x8xf32>
    tpu.vector_store %arg9[%c0_13, %c0_14], %26 {strides = array<i32>} : memref<8x8xf32, #tpu.memory_space<vmem>>, vector<8x8xf32>,
    %c0_i32_15 = arith.constant 0 : i32
    %28 = arith.cmpi eq, %arg1, %c0_i32_15 : i32
    %29 = arith.extui %28 : i1 to i32
    %c0_i32_16 = arith.constant 0 : i32
    %30 = arith.cmpi ne, %29, %c0_i32_16 : i32
    scf.if %30 {
      %c0_17 = arith.constant 0 : index
      %c0_18 = arith.constant 0 : index
      %31 = vector.load %arg9[%c0_17, %c0_18] : memref<8x8xf32, #tpu.memory_space<vmem>>, vector<8x8xf32>
      %32 = vector.shape_cast %31 : vector<8x8xf32> to vector<1x8x8xf32>
      %cst_19 = arith.constant dense<0.000000e+00> : vector<1xf32>
      %33 = vector.multi_reduction <add>, %32, %cst_19 [1, 2] : vector<1x8x8xf32> to vector<1xf32>
      %34 = vector.shape_cast %33 : vector<1xf32> to vector<1x1x1xf32>
      %35 = vector.extract %34[0, 0, 0] : f32 from vector<1x1x1xf32>
      %cst_20 = arith.constant 0.000000e+00 : f32
      %36 = arith.subf %cst_20, %35 : f32
      %c0_21 = arith.constant 0 : index
      %c0_22 = arith.constant 0 : index
      %37 = memref.load %arg7[%c0_21, %c0_22] : memref<1x1xf32, #tpu.memory_space<smem>>
      memref.store %36, %arg7[%c0_21, %c0_22] : memref<1x1xf32, #tpu.memory_space<smem>>
    } else {
    }
    return
  }
  func.func @transform_1(%arg0: i32, %arg1: i32, %arg2: memref<8xi32, #tpu.memory_space<smem>>) -> (i32, i32) {
    %c1_i32 = arith.constant 1 : i32
    %0 = arith.muli %arg0, %c1_i32 : i32
    %1 = arith.addi %0, %arg1 : i32
    %c0_i32 = arith.constant 0 : i32
    %c0_i32_0 = arith.constant 0 : i32
    return %c0_i32, %1 : i32, i32
  }
  func.func @transform_2(%arg0: i32, %arg1: i32, %arg2: memref<8xi32, #tpu.memory_space<smem>>) -> (i32, i32) {
    %c1_i32 = arith.constant 1 : i32
    %0 = arith.muli %arg0, %c1_i32 : i32
    %1 = arith.addi %0, %arg1 : i32
    %c0_i32 = arith.constant 0 : i32
    %c0_i32_0 = arith.constant 0 : i32
    return %c0_i32, %1 : i32, i32
  }
  func.func @transform_3(%arg0: i32, %arg1: i32, %arg2: memref<8xi32, #tpu.memory_space<smem>>) -> (i32, i32) {
    %c1_i32 = arith.constant 1 : i32
    %0 = arith.muli %arg0, %c1_i32 : i32
    %1 = arith.addi %0, %arg1 : i32
    %c0_i32 = arith.constant 0 : i32
    %c0_i32_0 = arith.constant 0 : i32
    return %c0_i32, %1 : i32, i32
  }
  func.func @transform_4(%arg0: i32, %arg1: i32, %arg2: memref<8xi32, #tpu.memory_space<smem>>) -> (i32, i32) {
    %c0_i32 = arith.constant 0 : i32
    %c0_i32_0 = arith.constant 0 : i32
    return %arg0, %c0_i32 : i32, i32
  }
}

</mosaic_0001>

<llo_original>
// kernel: network_model_forward.1
$region0: #{network_model_forward.1}
  #allocation0 [shape = 'u32[]', space=smem, size = 0x4, offset = 0x4, fixed_abs, tag = 'smem constant byte address 0x4 - core index']
  #allocation1 [shape = 'u32[144,128]{1,0:T(1,128)}', space=vmem, size = 0x12000, scoped, tag = 'internal scratch']
  #allocation2 [shape = 'f32[8,32]{1,0:T(8,128)}', space=vmem, size = 0x1000, scoped, tag = 'scratch operand']
  #allocation3 [shape = 'f32[8,8]{1,0:T(8,128)}', space=vmem, size = 0x1000, scoped, tag = 'scratch operand']
  #allocation4 [shape = 's32[8]{0}', space=sflag, size = 0x20, scoped, tag = 'scratch operand']
  #allocation5 [shape = 's32[1]{0}', space=sflag, size = 0x4, scoped, tag = 'scoped memory for network_model_forward.1']
  #allocation6 [shape = 'u8[512]{0}', space=smem, size = 0x200, scoped, tag = 'prefetched SMEM operand 0']
  #allocation9 [shape = 's32[]', space=sflag, size = 0x4, offset = 0, fixed_abs, tag = 'sflag constant byte address 0x0 - dummy sync flag']
  %s0 = inlined_call_operand.vmem [shape: s32[8], index: 0, kind: input, shape index: {}]
  %s1 = inlined_call_operand.vmem [shape: f32[8,32], index: 1, kind: input, shape index: {}]
  %s2 = inlined_call_operand.vmem [shape: f32[32,8], index: 2, kind: input, shape index: {}]
  %s3 = inlined_call_operand.vmem [shape: f32[1,8], index: 3, kind: input, shape index: {}]
  %s4 = inlined_call_operand.vmem [shape: f32[8,8], index: 4, kind: input, shape index: {}]
  %s5 = inlined_call_operand.hbm [shape: f32[1,1], index: 5, kind: output, shape index: {}]
  %s6 = sld [smem:[#allocation0]]
  $region74: #{network_model_forward.1} parent=0
    _
  %s8 = ssub.s32 1, %s6
  %s9 = scalar_select 0, %s8, %s6
  %s10 = sshll.u32 %s0, 4
  %s11 = int_to_ptr.vmem [resolvable:$true] %s10
  %13 = dma.vmem_to_smem %s11, 16, [#allocation6], [#allocation5]
  %14 = dma.done [#allocation5], 16
  %15 = sfence
  $region1: #{network_model_forward.1} parent=0
    #allocation7 [shape = 'u8[512]{0}', space=smem, size = 0x200, scoped, tag = 'output window, operand 0, single buffered']
    #allocation8 [shape = 's32[1]{0}', space=sflag, size = 0x4, scoped, tag = 'scoped memory for network_model_forward.1']
    %16 = vsyncpa [#allocation8], 0
    // Predicated region
    $region2: #{network_model_forward.1} parent=1 // pred_check
      _
    $region3: #{network_model_forward.1} parent=1 // pred_check_branch
      %18 = sbr.rel (0) target = $region5
    $region4: #{network_model_forward.1} parent=1 // pred_region
      %s19 = sadd.s32 0, 0
      %p20 = scmp.lt.s32.totalorder %s19, 0
      %s21 = scalar_select %p20, %s19, 0
      %s22 = smul.addr %s21, 8
      %s23 = scalar_lea.vmem %s2, %s22
      %s24 = sadd.s32 0, 0
    $region5: #{network_model_forward.1} parent=1 // pred_fallthru
      _
    // Predicated region
    $region6: #{network_model_forward.1} parent=1 // pred_check
      _
    $region7: #{network_model_forward.1} parent=1 // pred_check_branch
      %26 = sbr.rel (0) target = $region9
    $region8: #{network_model_forward.1} parent=1 // pred_region
      %s27 = sadd.s32 0, 0
      %p28 = scmp.lt.s32.totalorder %s27, 0
      %s29 = scalar_select %p28, %s27, 0
      %s30 = scalar_lea.vmem %s3, %s29
      %s31 = sadd.s32 0, 0
    $region9: #{network_model_forward.1} parent=1 // pred_fallthru
      _
    // Predicated region
    $region10: #{network_model_forward.1} parent=1 // pred_check
      _
    $region11: #{network_model_forward.1} parent=1 // pred_check_branch
      %33 = sbr.rel (0) target = $region13
    $region12: #{network_model_forward.1} parent=1 // pred_region
      %s34 = sadd.s32 0, 0
      %p35 = scmp.lt.s32.totalorder %s34, 0
      %s36 = scalar_select %p35, %s34, 0
      %s37 = smul.addr %s36, 8
      %s38 = scalar_lea.vmem %s4, %s37
      %s39 = sadd.s32 0, 0
    $region13: #{network_model_forward.1} parent=1 // pred_fallthru
      _
    %s40 = sadd.s32 0, 0
    %p41 = scmp.lt.s32.totalorder %s40, 0
    %s42 = scalar_select %p41, %s40, 0
    %s43 = smul.addr %s42, 8
    %s44 = scalar_lea.vmem %s2, %s43
    %s45 = sadd.s32 0, 0
    %p46 = scmp.lt.s32.totalorder %s45, 0
    %s47 = scalar_select %p46, %s45, 0
    %s48 = scalar_lea.vmem %s3, %s47
    %s49 = sadd.s32 0, 0
    %p50 = scmp.lt.s32.totalorder %s49, 0
    %s51 = scalar_select %p50, %s49, 0
    %s52 = smul.addr %s51, 8
    %s53 = scalar_lea.vmem %s4, %s52
    %s54 = sadd.s32 0, 0
    %p55 = scmp.lt.s32.totalorder %s54, 0
    %s56 = scalar_select %p55, %s54, 0
    %s57 = smul.addr %s56, 8
    %s58 = scalar_lea.vmem %s2, %s57
    %s59 = sadd.s32 0, 0
    %s60 = sadd.s32 0, 0
    %p61 = scmp.lt.s32.totalorder %s60, 0
    %s62 = scalar_select %p61, %s60, 0
    %s63 = scalar_lea.vmem %s3, %s62
    %s64 = sadd.s32 0, 0
    %s65 = sadd.s32 0, 0
    %p66 = scmp.lt.s32.totalorder %s65, 0
    %s67 = scalar_select %p66, %s65, 0
    %s68 = smul.addr %s67, 8
    %s69 = scalar_lea.vmem %s4, %s68
    %s70 = sadd.s32 0, 0
    %p71 = scmp.eq.s32.totalorder 0, 0
    // Predicated region
    $region14: #{network_model_forward.1} parent=1 // pred_check
      %p72 = pneg %p71
    $region15: #{network_model_forward.1} parent=1 // pred_check_branch
      %74 = sbr.rel (%p72) target = $region17
    $region16: #{network_model_forward.1} parent=1 // pred_region
      %vm75 = vcmask 64512
      %76 = vst.msk [vmem:[#allocation3] sm:$0xff] %vm75, 0.0
      loop: start=0, step=1, limit=8
      $region18: #{network_model_forward.1} parent=16 // loop_pre_header
        _
      $region19: #{network_model_forward.1} parent=16 // loop_header
        %s78 = sphi 0, %s82
        %p79 = scmp.ge.s32.totalorder %s78, 8
      $region20: #{network_model_forward.1} parent=16 // loop_header_branch
        %81 = sbr.rel (%p79) target = $region24
      $region21: #{network_model_forward.1} parent=16 // loop_body
        %s83 = sld [smem:[#allocation6 + %s78]]
        %s84 = scalar_lea.vmem %s1, %s83
        %s85 = scalar_lea.vmem [#allocation2], %s78
        %s86 = scalar_lea.sflag [#allocation4], %s78
        %p88 = scmp.lt.u32.totalorder 1, 8
        %p89 = pneg %p88
        // Predicated region
        $region25: #{network_model_forward.1} parent=21 // pred_check
          _
        $region26: #{network_model_forward.1} parent=21 // pred_check_branch
          %91 = sbr.rel (%p88) target = $region28
        $region27: #{network_model_forward.1} parent=21 // pred_region
          %s107 = sand.u32 1, 7
          %p108 = scmp.eq.s32.totalorder %s107, 0
          %p109 = pneg %p108
          // Predicated region
          $region40: #{network_model_forward.1} parent=27 // pred_check
            _
          $region41: #{network_model_forward.1} parent=27 // pred_check_branch
            %111 = sbr.rel (%p108) target = $region43
          $region42: #{network_model_forward.1} parent=27 // pred_region
            %s112 = sand.u32 1, 7
            %s113 = ssub.s32 1, %s112
            %s114 = scalar_lea.vmem %s84, %s113
            %s115 = ssub.s32 1, %s112
            %s116 = scalar_lea.vmem %s85, %s115 [#allocation2]
            %s117 = sshll.u32 1, %s112
            %s118 = ssub.s32 %s117, 1
            loop: start=0, step=1, limit=1
            $region44: #{network_model_forward.1} parent=42 // loop_pre_header
              _
            $region45: #{network_model_forward.1} parent=42 // loop_header
              %s120 = sphi 0, %s124
              %p121 = scmp.ge.s32.totalorder %s120, 1
              %s125 = sphi %s114, %s114
              %s126 = sphi %s116, %s116
            $region46: #{network_model_forward.1} parent=42 // loop_header_branch
              %123 = sbr.rel (%p121) target = $region50
            $region47: #{network_model_forward.1} parent=42 // loop_body
              %v127 = vld [vmem:[%s125] sm:%s118]
              %128 = vst [vmem:[%s126] sm:%s118] %v127
            $region48: #{network_model_forward.1} parent=42 // loop_footer
              %s124 = sadd.s32 1, %s120
            $region49: #{network_model_forward.1} parent=42 // loop_footer_branch
              %119 = sbr.rel target = $region45
            $region50: #{network_model_forward.1} parent=42 // loop_exit
              _
          $region43: #{network_model_forward.1} parent=27 // pred_fallthru
            _
        $region28: #{network_model_forward.1} parent=21 // pred_fallthru
          _
        // Predicated region
        $region29: #{network_model_forward.1} parent=21 // pred_check
          %p92 = pneg %p88
        $region30: #{network_model_forward.1} parent=21 // pred_check_branch
          %94 = sbr.rel (%p92) target = $region32
        $region31: #{network_model_forward.1} parent=21 // pred_region
          %s95 = sshll.u32 1, 1
          %s96 = ssub.s32 %s95, 1
          loop: start=0, step=1, limit=1
          $region33: #{network_model_forward.1} parent=31 // loop_pre_header
            _
          $region34: #{network_model_forward.1} parent=31 // loop_header
            %s98 = sphi 0, %s102
            %p99 = scmp.ge.s32.totalorder %s98, 1
            %s103 = sphi %s84, %s84
            %s104 = sphi %s85, %s85
          $region35: #{network_model_forward.1} parent=31 // loop_header_branch
            %101 = sbr.rel (%p99) target = $region39
          $region36: #{network_model_forward.1} parent=31 // loop_body
            %v105 = vld [vmem:[%s103] sm:%s96]
            %106 = vst [vmem:[%s104] sm:%s96] %v105
          $region37: #{network_model_forward.1} parent=31 // loop_footer
            %s102 = sadd.s32 1, %s98
          $region38: #{network_model_forward.1} parent=31 // loop_footer_branch
            %97 = sbr.rel target = $region34
          $region39: #{network_model_forward.1} parent=31 // loop_exit
            _
        $region32: #{network_model_forward.1} parent=21 // pred_fallthru
          _
        // Predicated region
        $region51: #{network_model_forward.1} parent=21 // pred_check
          _
        $region52: #{network_model_forward.1} parent=21 // pred_check_branch
          %131 = sbr.rel (0) target = $region54
        $region53: #{network_model_forward.1} parent=21 // pred_region
          %132 = vsyncadd %s86, 16
        $region54: #{network_model_forward.1} parent=21 // pred_fallthru
          _
      $region22: #{network_model_forward.1} parent=16 // loop_footer
        %s82 = sadd.s32 1, %s78
      $region23: #{network_model_forward.1} parent=16 // loop_footer_branch
        %77 = sbr.rel target = $region19
      $region24: #{network_model_forward.1} parent=16 // loop_exit
        _
      loop: start=0, step=1, limit=8
      $region55: #{network_model_forward.1} parent=16 // loop_pre_header
        _
      $region56: #{network_model_forward.1} parent=16 // loop_header
        %s134 = sphi 0, %s138
        %p135 = scmp.ge.s32.totalorder %s134, 8
      $region57: #{network_model_forward.1} parent=16 // loop_header_branch
        %137 = sbr.rel (%p135) target = $region61
      $region58: #{network_model_forward.1} parent=16 // loop_body
        %s139 = sld [smem:[#allocation6 + %s134]]
        %s140 = scalar_lea.sflag [#allocation4], %s134
        %s141 = smul.u32 1, 1
        %s142 = sshll.u32 %s141, 4
        %143 = dma.done %s140, %s142
      $region59: #{network_model_forward.1} parent=16 // loop_footer
        %s138 = sadd.s32 1, %s134
      $region60: #{network_model_forward.1} parent=16 // loop_footer_branch
        %133 = sbr.rel target = $region56
      $region61: #{network_model_forward.1} parent=16 // loop_exit
        _
    $region17: #{network_model_forward.1} parent=1 // pred_fallthru
      _
    %v144 = vld [vmem:[#allocation2] sm:$0xff]
    %v145 = vld [vmem:[%s58] sm:$0xff]
    %v146 = vld [vmem:[%s58 + $0x8] sm:$0xff]
    %v147 = vld [vmem:[%s58 + $0x10] sm:$0xff]
    %v148 = vld [vmem:[%s58 + $0x18] sm:$0xff]
    %v149 = vld [vmem:[%s63] sm:$0x1]
    %v151 = vlaneseq
    %v152 = vshrl.u32 %v151, 7
    %v153 = vsub.s32 0, %v152
    %v154 = vrot.slane %v149, %v153
    %vm156 = vcmask 261120
    %v158 = vsel %vm156, %v144, 0
    %160 = vmatprep.subr.mxu0 0.0
    %161 = vmatpush1.msra.mxu0 0.0
    %162 = vmatprep.subr.mxu0 0.0
    %163 = vmatpush1.msra.mxu0 0.0
    %164 = vmatprep.subr.mxu0 0.0
    %165 = vmatpush1.msra.mxu0 0.0
    %166 = vmatprep.subr.mxu0 0.0
    %167 = vmatpush1.msra.mxu0 0.0
    %168 = vmatprep.subr.mxu0 0.0
    %169 = vmatpush1.msra.mxu0 0.0
    %170 = vmatprep.subr.mxu0 0.0
    %171 = vmatpush1.msra.mxu0 0.0
    %172 = vmatprep.subr.mxu0 0.0
    %173 = vmatpush1.msra.mxu0 0.0
    %174 = vmatprep.subr.mxu0 0.0
    %175 = vmatpush1.msra.mxu0 0.0
    %176 = vmatprep.subr.mxu0 0.0
    %177 = vmatpush1.msra.mxu0 0.0
    %178 = vmatprep.subr.mxu0 0.0
    %179 = vmatpush1.msra.mxu0 0.0
    %180 = vmatprep.subr.mxu0 0.0
    %181 = vmatpush1.msra.mxu0 0.0
    %182 = vmatprep.subr.mxu0 0.0
    %183 = vmatpush1.msra.mxu0 0.0
    %184 = vmatprep.subr.mxu0 0.0
    %185 = vmatpush1.msra.mxu0 %v148
    %186 = vmatprep.subr.mxu0 0.0
    %187 = vmatpush1.msra.mxu0 %v147
    %188 = vmatprep.subr.mxu0 0.0
    %189 = vmatpush1.msra.mxu0 %v146
    %190 = vmatprep.subr.mxu0 0.0
    %191 = vmatpush1.msra.mxu0 %v145
    %192 = vmatprep.subr.mxu0 0.0
    %193 = vmatpush2.msra.mxu0 0.0
    %194 = vmatprep.subr.mxu0 0.0
    %195 = vmatpush2.msra.mxu0 0.0
    %196 = vmatprep.subr.mxu0 0.0
    %197 = vmatpush2.msra.mxu0 0.0
    %198 = vmatprep.subr.mxu0 0.0
    %199 = vmatpush2.msra.mxu0 0.0
    %200 = vmatprep.subr.mxu0 0.0
    %201 = vmatpush2.msra.mxu0 0.0
    %202 = vmatprep.subr.mxu0 0.0
    %203 = vmatpush2.msra.mxu0 0.0
    %204 = vmatprep.subr.mxu0 0.0
    %205 = vmatpush2.msra.mxu0 0.0
    %206 = vmatprep.subr.mxu0 0.0
    %207 = vmatpush2.msra.mxu0 0.0
    %208 = vmatprep.subr.mxu0 0.0
    %209 = vmatpush2.msra.mxu0 0.0
    %210 = vmatprep.subr.mxu0 0.0
    %211 = vmatpush2.msra.mxu0 0.0
    %212 = vmatprep.subr.mxu0 0.0
    %213 = vmatpush2.msra.mxu0 0.0
    %214 = vmatprep.subr.mxu0 0.0
    %215 = vmatpush2.msra.mxu0 0.0
    %216 = vmatprep.subr.mxu0 0.0
    %217 = vmatpush2.msra.mxu0 0.0
    %218 = vmatprep.subr.mxu0 0.0
    %219 = vmatpush2.msra.mxu0 0.0
    %220 = vmatprep.subr.mxu0 0.0
    %221 = vmatpush2.msra.mxu0 0.0
    %222 = vmatprep.subr.mxu0 0.0
    %223 = vmatpush2.msra.mxu0 0.0
    %224 = vmatprep.mubr.f32.mxu0 0.0
    %225 = vmatmul.mubr.f32.gmra.mxu0 %v158
    %v226 = vpop.f32.mrf.mxu0
    %v227 = vadd.f32 %v154, %v226
    %v228 = vpop.f32.mrf.mxu0
    %229 = vdwg.mxu0
    %vm230 = vcmask 64512
    %v231 = vsel %vm230, %v227, -inf
    %v232 = vrot.slane %v231, 4
    %v233 = vmax.f32 %v231, %v232
    %v234 = vrot.slane %v233, 2
    %v235 = vmax.f32 %v233, %v234
    %v236 = vrot.slane %v235, 1
    %v237 = vmax.f32 %v235, %v236
    %v238 = vsub.f32 %v227, %v237
    %v239 = vmul.f32 %v238, 1.442695
    %v240 = vpow.pop %v239
    %v241 = vsel %vm230, %v240, 0.0
    %v242 = vrot.slane %v241, 4
    %v243 = vadd.f32 %v241, %v242
    %v244 = vrot.slane %v243, 2
    %v245 = vadd.f32 %v243, %v244
    %v246 = vrot.slane %v245, 1
    %v247 = vadd.f32 %v245, %v246
    %v248 = vlog2.pop %v247
    %v249 = vmul.f32 %v248, 0.6931472
    %v250 = vsub.f32 %v238, %v249
    %v251 = vmax.f32 %v250, -23.02585
    %v252 = vld [vmem:[%s69] sm:$0xff]
    %v253 = vmul.f32 %v252, %v251
    %v254 = vld [vmem:[#allocation3] sm:$0xff]
    %v255 = vadd.f32 %v254, %v253
    %256 = vst.msk [vmem:[#allocation3] sm:$0xff] %vm230, %v255
    // Predicated region
    $region62: #{network_model_forward.1} parent=1 // pred_check
      %p257 = pneg %p71
    $region63: #{network_model_forward.1} parent=1 // pred_check_branch
      %259 = sbr.rel (%p257) target = $region65
    $region64: #{network_model_forward.1} parent=1 // pred_region
      %v260 = vld [vmem:[#allocation3] sm:$0xff]
      %v261 = vsel %vm230, %v260, 0.0
      %262 = vadd.xlane.f32.xlu0 %v261
      %v263 = vpop.xlane.xlu0 %262
      %v264 = vrot.slane %v263, 4
      %v265 = vadd.f32 %v263, %v264
      %v266 = vrot.slane %v265, 2
      %v267 = vadd.f32 %v265, %v266
      %v268 = vrot.slane %v267, 1
      %v269 = vadd.f32 %v267, %v268
      %s270 = vtos %v269
      %s271 = ssub.f32 0.0, %s270
      %s272 = scalar_lea.smem [#allocation7], 0
      %273 = sst [smem:[%s272]] %s271
    $region65: #{network_model_forward.1} parent=1 // pred_fallthru
      _
    // Predicated region
    $region66: #{network_model_forward.1} parent=1 // pred_check
      _
    $region67: #{network_model_forward.1} parent=1 // pred_check_branch
      %275 = sbr.rel (0) target = $region69
    $region68: #{network_model_forward.1} parent=1 // pred_region
      %s277 = ssub.s32 16, 16
      %278 = vsyncadd [#allocation8], %s277
      %281 = dma.smem_to_hbm [#allocation7], 16, %s5, [#allocation8]
    $region69: #{network_model_forward.1} parent=1 // pred_fallthru
      _
    // Predicated region
    $region70: #{network_model_forward.1} parent=1 // pred_check
      _
    $region71: #{network_model_forward.1} parent=1 // pred_check_branch
      %283 = sbr.rel (0) target = $region73
    $region72: #{network_model_forward.1} parent=1 // pred_region
      %284 = dma.done [#allocation8], 16
    $region73: #{network_model_forward.1} parent=1 // pred_fallthru
      _
    %285 = sfence
    %286 = vsyncpa [#allocation8], 1
  %287 = vsyncmov [#allocation4]
  %s288 = vpop.sfrf %287
  %p289 = scmp.eq.s32.totalorder %s288, 0
  %p290 = pneg %p289
  %292 = shalt.err (%p290)
  %s293 = scalar_lea.sflag [#allocation4], 1
  %294 = vsyncmov %s293
  %s295 = vpop.sfrf %294
  %p296 = scmp.eq.s32.totalorder %s295, 0
  %p297 = pneg %p296
  %299 = shalt.err (%p297)
  %s300 = scalar_lea.sflag [#allocation4], 2
  %301 = vsyncmov %s300
  %s302 = vpop.sfrf %301
  %p303 = scmp.eq.s32.totalorder %s302, 0
  %p304 = pneg %p303
  %306 = shalt.err (%p304)
  %s307 = scalar_lea.sflag [#allocation4], 3
  %308 = vsyncmov %s307
  %s309 = vpop.sfrf %308
  %p310 = scmp.eq.s32.totalorder %s309, 0
  %p311 = pneg %p310
  %313 = shalt.err (%p311)
  %s314 = scalar_lea.sflag [#allocation4], 4
  %315 = vsyncmov %s314
  %s316 = vpop.sfrf %315
  %p317 = scmp.eq.s32.totalorder %s316, 0
  %p318 = pneg %p317
  %320 = shalt.err (%p318)
  %s321 = scalar_lea.sflag [#allocation4], 5
  %322 = vsyncmov %s321
  %s323 = vpop.sfrf %322
  %p324 = scmp.eq.s32.totalorder %s323, 0
  %p325 = pneg %p324
  %327 = shalt.err (%p325)
  %s328 = scalar_lea.sflag [#allocation4], 6
  %329 = vsyncmov %s328
  %s330 = vpop.sfrf %329
  %p331 = scmp.eq.s32.totalorder %s330, 0
  %p332 = pneg %p331
  %334 = shalt.err (%p332)
  %s335 = scalar_lea.sflag [#allocation4], 7
  %336 = vsyncmov %s335
  %s337 = vpop.sfrf %336
  %p338 = scmp.eq.s32.totalorder %s337, 0
  %p339 = pneg %p338
  %341 = shalt.err (%p339)

</llo_original>
